<compile_context>
chip_gen: v6e
topology: v6e:2x2x1
jax: 0.10.0
libtpu: 0.0.40
codegen_flags: <defaults>
</compile_context>

<pallas_src>
import math

import jax
import jax.numpy as jnp
from jax.experimental import pallas as pl
from jax.experimental.pallas import tpu as pltpu


# ----------------------------- helpers -----------------------------

def _round_up(x, m):
    return (x + m - 1) // m * m


def _row_tiling(m):
    """bf16-sublane-aligned (16) row tile and padded row count."""
    if m >= 256:
        return 256, _round_up(m, 256)
    t = _round_up(m, 16)
    return t, t


def _pad_rows(x, m_pad):
    m = x.shape[0]
    if m == m_pad:
        return x
    return jnp.pad(x, ((0, m_pad - m), (0, 0)))


_VMEM_LIMIT = None


def _vmem_limit():
    """Generation-aware scoped-VMEM request (75% of physical capacity)."""
    global _VMEM_LIMIT
    if _VMEM_LIMIT is None:
        cap = None
        try:
            cap = int(pltpu.get_tpu_info().vmem_capacity_bytes)
        except Exception:
            cap = None
        if not cap or cap <= 0:
            _VMEM_LIMIT = 48 * 1024 * 1024          # safe on v5e/v6e/v7x
        else:
            _VMEM_LIMIT = (cap * 3) // 4            # ~96 MiB v5e/v6e, ~48 MiB v7x
    return _VMEM_LIMIT


# ----------------------------- Pallas kernels -----------------------------

def _make_linear_kernel(has_bias, has_res, activation):
    """Row-tiled matmul against a VMEM-resident weight.
    Optional bias / QuickGELU / fused residual add."""

    def kernel(*refs):
        x_ref, w_ref = refs[0], refs[1]
        o_ref = refs[-1]
        extra = list(refs[2:-1])
        b_ref = extra.pop(0) if has_bias else None
        r_ref = extra.pop(0) if has_res else None

        y = jnp.dot(x_ref[...], w_ref[...], preferred_element_type=jnp.float32)
        if has_bias:
            y = y + b_ref[...].astype(jnp.float32)
        if activation == "quickgelu":
            y = y * jax.nn.sigmoid(1.702 * y)           # CLIP QuickGELU
        if has_res:
            y = y + r_ref[...].astype(jnp.float32)
        o_ref[...] = y.astype(o_ref.dtype)

    return kernel


def _make_ln_linear_kernel(has_bias, activation):
    """LayerNorm fused into a matmul (K and N kept whole: exact LN stats,
    computed once per row tile)."""

    def kernel(*refs):
        x_ref, g_ref, bt_ref, w_ref = refs[:4]
        b_ref = refs[4] if has_bias else None
        o_ref = refs[-1]

        x = x_ref[...].astype(jnp.float32)
        mean = jnp.mean(x, axis=-1, keepdims=True)
        xc = x - mean
        var = jnp.mean(xc * xc, axis=-1, keepdims=True)
        h = xc * jax.lax.rsqrt(var + 1e-5)
        h = h * g_ref[...].astype(jnp.float32) + bt_ref[...].astype(jnp.float32)

        y = jnp.dot(h.astype(w_ref.dtype), w_ref[...],
                    preferred_element_type=jnp.float32)
        if has_bias:
            y = y + b_ref[...].astype(jnp.float32)
        if activation == "quickgelu":
            y = y * jax.nn.sigmoid(1.702 * y)
        o_ref[...] = y.astype(o_ref.dtype)

    return kernel


def _ln_pos_kernel(x_ref, p_ref, g_ref, b_ref, o_ref):
    """ln_pre(x + positional_embedding) for one batch element."""
    x = x_ref[0].astype(jnp.float32) + p_ref[...].astype(jnp.float32)
    mean = jnp.mean(x, axis=-1, keepdims=True)
    xc = x - mean
    var = jnp.mean(xc * xc, axis=-1, keepdims=True)
    y = xc * jax.lax.rsqrt(var + 1e-5)
    o_ref[0] = (y * g_ref[...].astype(jnp.float32)
                + b_ref[...].astype(jnp.float32)).astype(o_ref.dtype)


def _attention_head(q, k, v, causal, scale, out_dtype):
    """One head: q,k,v (T, dh) bf16 -> (T, dh) out_dtype."""
    s = jax.lax.dot_general(q, k, (((1,), (1,)), ((), ())),
                            preferred_element_type=jnp.float32) * scale   # (T, T)
    if causal:
        T = q.shape[0]
        row = jax.lax.broadcasted_iota(jnp.int32, (T, T), 0)
        col = jax.lax.broadcasted_iota(jnp.int32, (T, T), 1)
        s = jnp.where(col <= row, s, -1e30)          # in-kernel causal mask
    s = s - jnp.max(s, axis=-1, keepdims=True)
    p = jnp.exp(s)
    p = p * pl.reciprocal(jnp.sum(p, axis=-1, keepdims=True), approx=True)
    o = jnp.dot(p.astype(v.dtype), v, preferred_element_type=jnp.float32)
    return o.astype(out_dtype)


def _make_attn_group_kernel(heads_per_group, head_dim, causal):
    """Grid (B, n_groups): q/k/v blocks are 128-lane-aligned head groups."""

    def kernel(q_ref, k_ref, v_ref, o_ref):
        scale = 1.0 / math.sqrt(head_dim)
        # TODO(synk): dh=64 still underfills the 256x256 MXUs on v6e/v7x;
        # packing head pairs along the contraction (block-diagonal) would
        # raise utilization further.
        for h in range(heads_per_group):
            sl = slice(h * head_dim, (h + 1) * head_dim)
            o_ref[0, :, sl] = _attention_head(
                q_ref[0, :, sl], k_ref[0, :, sl], v_ref[0, :, sl],
                causal, scale, o_ref.dtype)

    return kernel


def _make_attn_fused_kernel(num_heads, head_dim, causal):
    """Grid (B,): whole fused (T, 3D) QKV block, per-head direct write-out."""
    D = num_heads * head_dim

    def kernel(qkv_ref, o_ref):
        scale = 1.0 / math.sqrt(head_dim)
        for h in range(num_heads):
            q = qkv_ref[0, :, h * head_dim:(h + 1) * head_dim]
            k = qkv_ref[0, :, D + h * head_dim:D + (h + 1) * head_dim]
            v = qkv_ref[0, :, 2 * D + h * head_dim:2 * D + (h + 1) * head_dim]
            o_ref[0, :, h * head_dim:(h + 1) * head_dim] = _attention_head(
                q, k, v, causal, scale, o_ref.dtype)

    return kernel


def _clip_logits_kernel(img_ref, txt_ref, ls_ref, o_ref):
    img = img_ref[...].astype(jnp.float32)
    txt = txt_ref[...].astype(jnp.float32)
    img = img * jax.lax.rsqrt(jnp.sum(img * img, axis=-1, keepdims=True) + 1e-12)
    txt = txt * jax.lax.rsqrt(jnp.sum(txt * txt, axis=-1, keepdims=True) + 1e-12)
    scale = jnp.exp(ls_ref[0, 0])
    logits = jax.lax.dot_general(img, txt, (((1,), (1,)), ((), ())),
                                 preferred_element_type=jnp.float32)
    o_ref[...] = (scale * logits).astype(o_ref.dtype)


# ----------------------------- Pallas wrappers -----------------------------

def pallas_linear(x, w, b=None, activation=None, residual=None,
                  out_dtype=jnp.bfloat16):
    """x: (M, K) @ VMEM-resident w: (K, N) [+ b] [-> QuickGELU] [+ residual]."""
    M, K = x.shape
    _, N = w.shape
    tm, m_pad = _row_tiling(M)
    # TODO(synk): add a K-streamed accumulator fallback (with pl.Buffered(3)
    # weight pipelining for v5e) for weights too large to stay VMEM-resident;
    # not needed for CLIP-sized layers.

    args = [_pad_rows(x.astype(jnp.bfloat16), m_pad), w.astype(jnp.bfloat16)]
    in_specs = [pl.BlockSpec((tm, K), lambda i: (i, 0)),
                pl.BlockSpec((K, N), lambda i: (0, 0))]   # constant index: one DMA
    if b is not None:
        args.append(b.reshape(1, N).astype(jnp.float32))
        in_specs.append(pl.BlockSpec((1, N), lambda i: (0, 0)))
    if residual is not None:
        args.append(_pad_rows(residual.astype(jnp.bfloat16), m_pad))
        in_specs.append(pl.BlockSpec((tm, N), lambda i: (i, 0)))

    kern = _make_linear_kernel(b is not None, residual is not None, activation)
    out = pl.pallas_call(
        kern,
        out_shape=jax.ShapeDtypeStruct((m_pad, N), out_dtype),
        grid=(m_pad // tm,),
        in_specs=in_specs,
        out_specs=pl.BlockSpec((tm, N), lambda i: (i, 0)),
        compiler_params=pltpu.CompilerParams(
            dimension_semantics=("parallel",),
            vmem_limit_bytes=_vmem_limit()),
    )(*args)
    return out[:M] if m_pad != M else out


def pallas_ln_linear(x, gamma, beta, w, b=None, activation=None,
                     out_dtype=jnp.bfloat16):
    """LayerNorm(x) @ VMEM-resident w [+ b] [-> QuickGELU]."""
    M, K = x.shape
    _, N = w.shape
    tm, m_pad = _row_tiling(M)

    args = [_pad_rows(x.astype(jnp.bfloat16), m_pad),
            gamma.reshape(1, K).astype(jnp.float32),
            beta.reshape(1, K).astype(jnp.float32),
            w.astype(jnp.bfloat16)]
    in_specs = [pl.BlockSpec((tm, K), lambda i: (i, 0)),
                pl.BlockSpec((1, K), lambda i: (0, 0)),
                pl.BlockSpec((1, K), lambda i: (0, 0)),
                pl.BlockSpec((K, N), lambda i: (0, 0))]
    if b is not None:
        args.append(b.reshape(1, N).astype(jnp.float32))
        in_specs.append(pl.BlockSpec((1, N), lambda i: (0, 0)))

    kern = _make_ln_linear_kernel(b is not None, activation)
    out = pl.pallas_call(
        kern,
        out_shape=jax.ShapeDtypeStruct((m_pad, N), out_dtype),
        grid=(m_pad // tm,),
        in_specs=in_specs,
        out_specs=pl.BlockSpec((tm, N), lambda i: (i, 0)),
        compiler_params=pltpu.CompilerParams(
            dimension_semantics=("parallel",),
            vmem_limit_bytes=_vmem_limit()),
    )(*args)
    return out[:M] if m_pad != M else out


def pallas_add_pos_layernorm(x, pos, gamma, beta, out_dtype=jnp.bfloat16):
    """ln_pre(x + pos): x (B, T, D), pos (T, D) -> (B, T, D)."""
    B, T, D = x.shape
    return pl.pallas_call(
        _ln_pos_kernel,
        out_shape=jax.ShapeDtypeStruct((B, T, D), out_dtype),
        grid=(B,),
        in_specs=[pl.BlockSpec((1, T, D), lambda b: (b, 0, 0)),
                  pl.BlockSpec((T, D), lambda b: (0, 0)),
                  pl.BlockSpec((1, D), lambda b: (0, 0)),
                  pl.BlockSpec((1, D), lambda b: (0, 0))],
        out_specs=pl.BlockSpec((1, T, D), lambda b: (b, 0, 0)),
        compiler_params=pltpu.CompilerParams(
            dimension_semantics=("parallel",),
            vmem_limit_bytes=_vmem_limit()),
    )(x.astype(jnp.bfloat16), pos.astype(jnp.float32),
      gamma.reshape(1, D).astype(jnp.float32),
      beta.reshape(1, D).astype(jnp.float32))


def pallas_attention(qkv, num_heads, causal=False):
    """qkv: (B, T, 3D) fused projection -> (B, T, D) MHSA output."""
    B, T, three_d = qkv.shape
    D = three_d // 3
    dh = D // num_heads
    qkv = qkv.astype(jnp.bfloat16)

    # Prefer a (B, n_groups) grid with 128-lane-aligned head groups: gives
    # both TensorCores work on v7x and keeps per-step VMEM bounded.
    gw = None
    cand = dh
    while cand <= D:
        if cand % 128 == 0 and D % cand == 0:
            gw = cand
            break
        cand += dh

    if gw is not None:
        ng = D // gw
        kern = _make_attn_group_kernel(gw // dh, dh, causal)
        return pl.pallas_call(
            kern,
            out_shape=jax.ShapeDtypeStruct((B, T, D), jnp.bfloat16),
            grid=(B, ng),
            in_specs=[pl.BlockSpec((1, T, gw), lambda b, g: (b, 0, g)),
                      pl.BlockSpec((1, T, gw), lambda b, g: (b, 0, ng + g)),
                      pl.BlockSpec((1, T, gw), lambda b, g: (b, 0, 2 * ng + g))],
            out_specs=pl.BlockSpec((1, T, gw), lambda b, g: (b, 0, g)),
            compiler_params=pltpu.CompilerParams(
                dimension_semantics=("parallel", "parallel"),
                vmem_limit_bytes=_vmem_limit()),
        )(qkv, qkv, qkv)

    # Fallback for widths that cannot be 128-lane grouped (small test shapes):
    # whole fused QKV block per batch element, per-head direct write-out.
    kern = _make_attn_fused_kernel(num_heads, dh, causal)
    return pl.pallas_call(
        kern,
        out_shape=jax.ShapeDtypeStruct((B, T, D), jnp.bfloat16),
        grid=(B,),
        in_specs=[pl.BlockSpec((1, T, three_d), lambda b: (b, 0, 0))],
        out_specs=pl.BlockSpec((1, T, D), lambda b: (b, 0, 0)),
        compiler_params=pltpu.CompilerParams(
            dimension_semantics=("parallel",),
            vmem_limit_bytes=_vmem_limit()),
    )(qkv)


def pallas_clip_logits(image_features, text_features, logit_scale):
    B = image_features.shape[0]
    C = text_features.shape[0]
    vmem = pl.BlockSpec(memory_space=pltpu.MemorySpace.VMEM)
    return pl.pallas_call(
        _clip_logits_kernel,
        out_shape=jax.ShapeDtypeStruct((B, C), jnp.float32),
        in_specs=[vmem, vmem, vmem],
        out_specs=vmem,
    )(image_features.astype(jnp.float32), text_features.astype(jnp.float32),
      logit_scale.reshape(1, 1).astype(jnp.float32))


# ----------------------------- model pieces -----------------------------

def residual_attention_block(x, lp, causal, num_heads):
    """CLIP ResidualAttentionBlock.  x: (B, T, D) bf16 -> (B, T, D) bf16."""
    B, T, D = x.shape
    xf = x.reshape(B * T, D)
    # ln1 fused into the QKV projection (weight-resident)
    qkv = pallas_ln_linear(xf, lp['ln1_g'], lp['ln1_b'],
                           lp['attn_in_w'], lp['attn_in_b'])          # (B*T, 3D)
    attn = pallas_attention(qkv.reshape(B, T, 3 * D), num_heads, causal=causal)
    # attn output projection with fused residual add
    xf = pallas_linear(attn.reshape(B * T, D), lp['attn_out_w'], lp['attn_out_b'],
                       residual=xf)
    # ln2 fused into mlp_fc + QuickGELU, residual fused into mlp_proj
    h = pallas_ln_linear(xf, lp['ln2_g'], lp['ln2_b'],
                         lp['mlp_fc_w'], lp['mlp_fc_b'], activation='quickgelu')
    xf = pallas_linear(h, lp['mlp_proj_w'], lp['mlp_proj_b'], residual=xf)
    return xf.reshape(B, T, D)


def encode_text(params, cfg):
    C, T, D = cfg['num_classes'], cfg['ctx_len'], cfg['text_width']
    ncw = cfg['num_context_word']
    tok = params['class_text_inputs']                                 # (C, T)
    class_emb = params['token_embedding'][tok]                        # gather (glue)
    pre = class_emb[:, :1, :]
    post = class_emb[:, 1:T - ncw, :]
    x = jnp.concatenate([pre, params['context_embedding'], post], axis=1)   # (C, T, D)
    # TODO(synk): the text residual stream is x+pos itself, so this small
    # elementwise add stays at the JAX level (cannot be hidden in a kernel
    # without also threading pos through the first residual add).
    x = (x + params['positional_embedding'][None, :, :]).astype(jnp.bfloat16)
    # (torch permutes to (T, B, D) and back; computation is identical batch-first)
    for lp in params['text_layers']:
        x = residual_attention_block(x, lp, True, cfg['text_heads'])
    eot_idx = jnp.argmax(tok, axis=-1) + ncw
    x_eot = x[jnp.arange(C), eot_idx]                                 # (C, D) gather (glue)
    # ln_final applied only to the gathered rows, fused with text_projection
    return pallas_ln_linear(x_eot, params['ln_final_g'], params['ln_final_b'],
                            params['text_projection'], out_dtype=jnp.float32)


def encode_image(params, cfg, image):
    B, Cc, H, W = image.shape
    p, D = cfg['patch'], cfg['vision_width']
    gh, gw = H // p, W // p
    # patchify (glue): NCHW -> (B, P, C*p*p) with (c, ph, pw) flatten order,
    # matching a stride-p conv weight flattened as (C*p*p, D).
    patches = image.reshape(B, Cc, gh, p, gw, p)
    patches = jnp.transpose(patches, (0, 2, 4, 1, 3, 5)).reshape(B, gh * gw, Cc * p * p)
    x = pallas_linear(patches.reshape(B * gh * gw, Cc * p * p), params['conv1_w'])
    x = x.reshape(B, gh * gw, D)
    cls = jnp.broadcast_to(params['vis_class_embedding'][None, None, :].astype(jnp.bfloat16),
                           (B, 1, D))
    x = jnp.concatenate([cls, x], axis=1)                             # (B, P+1, D)
    # positional-embedding add fused into ln_pre (saves a full HBM round trip)
    x = pallas_add_pos_layernorm(x, params['vis_positional_embedding'],
                                 params['ln_pre_g'], params['ln_pre_b'])
    for lp in params['vision_layers']:
        x = residual_attention_block(x, lp, False, cfg['vision_heads'])
    # ln_post applied only to the cls token, fused with the vision projection
    return pallas_ln_linear(x[:, 0, :], params['ln_post_g'], params['ln_post_b'],
                            params['vis_proj'], out_dtype=jnp.float32)


def coop_forward(params, cfg, image):
    text_features = encode_text(params, cfg)
    image_features = encode_image(params, cfg, image)
    return pallas_clip_logits(image_features, text_features, params['logit_scale'])


# ----------------------------- deterministic params -----------------------------

def init_params(key, cfg):
    D, VD, E = cfg['text_width'], cfg['vision_width'], cfg['embed_dim']
    T, C, V = cfg['ctx_len'], cfg['num_classes'], cfg['vocab']
    p = cfg['patch']
    G = cfg['image_size'] // p
    keys = iter(jax.random.split(key, 64))

    def nrm(shape, scale, dtype=jnp.bfloat16):
        return (scale * jax.random.normal(next(keys), shape, jnp.float32)).astype(dtype)

    def make_block(width):
        return dict(
            ln1_g=jnp.ones((width,), jnp.float32), ln1_b=jnp.zeros((width,), jnp.float32),
            attn_in_w=nrm((width, 3 * width), width ** -0.5),
            attn_in_b=jnp.zeros((3 * width,), jnp.float32),
            attn_out_w=nrm((width, width), width ** -0.5),
            attn_out_b=jnp.zeros((width,), jnp.float32),
            ln2_g=jnp.ones((width,), jnp.float32), ln2_b=jnp.zeros((width,), jnp.float32),
            mlp_fc_w=nrm((width, 4 * width), width ** -0.5),
            mlp_fc_b=jnp.zeros((4 * width,), jnp.float32),
            mlp_proj_w=nrm((4 * width, width), (4 * width) ** -0.5),
            mlp_proj_b=jnp.zeros((width,), jnp.float32),
        )

    # synthetic "clip.tokenize" of each class name: [SOT, class_token, EOT, pad...]
    # TODO(synk): real CoOp tokenizes class-name strings with the CLIP BPE tokenizer.
    sot, eot = V - 2, V - 1
    tok = jnp.zeros((C, T), jnp.int32)
    tok = tok.at[:, 0].set(sot)
    tok = tok.at[:, 1].set(jnp.arange(1, C + 1, dtype=jnp.int32))
    tok = tok.at[:, 2].set(eot)

    return dict(
        class_text_inputs=tok,
        token_embedding=nrm((V, D), 0.02),
        positional_embedding=nrm((T, D), 0.01),
        # nn.Parameter(torch.randn(C, ncw, D) / D**0.5)
        context_embedding=nrm((C, cfg['num_context_word'], D), 1.0 / math.sqrt(D)),
        text_layers=[make_block(D) for _ in range(cfg['text_layers'])],
        ln_final_g=jnp.ones((D,), jnp.float32), ln_final_b=jnp.zeros((D,), jnp.float32),
        text_projection=nrm((D, E), D ** -0.5),
        conv1_w=nrm((3 * p * p, VD), (3 * p * p) ** -0.5),   # conv1 (no bias), flattened
        vis_class_embedding=nrm((VD,), VD ** -0.5),
        vis_positional_embedding=nrm((G * G + 1, VD), 0.01),
        ln_pre_g=jnp.ones((VD,), jnp.float32), ln_pre_b=jnp.zeros((VD,), jnp.float32),
        vision_layers=[make_block(VD) for _ in range(cfg['vision_layers'])],
        ln_post_g=jnp.ones((VD,), jnp.float32), ln_post_b=jnp.zeros((VD,), jnp.float32),
        vis_proj=nrm((VD, E), VD ** -0.5),
        logit_scale=jnp.array(math.log(1.0 / 0.07), jnp.float32),
    )


# ----------------------------- main -----------------------------

if __name__ == "__main__":
    cfg = dict(
        num_classes=4, ctx_len=8, vocab=64,
        text_width=32, text_heads=4, text_layers=2,
        num_context_word=1,
        image_size=16, patch=8,
        vision_width=32, vision_heads=4, vision_layers=2,
        embed_dim=32,
    )
    key = jax.random.PRNGKey(0)
    pkey, ikey = jax.random.split(key)
    params = init_params(pkey, cfg)
    image = jax.random.normal(ikey, (2, 3, cfg['image_size'], cfg['image_size']), jnp.float32)

    logits_per_image = coop_forward(params, cfg, image)
    logits_per_image = jax.block_until_ready(logits_per_image)

    assert logits_per_image.shape == (2, cfg['num_classes'])
    assert bool(jnp.all(jnp.isfinite(logits_per_image)))
    print("KERNEL_OK")
</pallas_src>

<mosaic_0001>
module attributes {stable_mosaic.version = 11 : i64} {
  func.func @kernel(%arg0: i32, %arg1: memref<32x32xbf16, #tpu.memory_space<vmem>>, %arg2: memref<1x32xf32, #tpu.memory_space<vmem>>, %arg3: memref<1x32xf32, #tpu.memory_space<vmem>>, %arg4: memref<32x96xbf16, #tpu.memory_space<vmem>>, %arg5: memref<1x96xf32, #tpu.memory_space<vmem>>, %arg6: memref<32x96xbf16, #tpu.memory_space<vmem>>) attributes {dimension_semantics = [#tpu.dimension_semantics<parallel>], iteration_bounds = array<i64: 1>, scalar_prefetch = 0 : i64, scratch_operands = 0 : i64, tpu.core_type = #tpu.core_type<tc>, window_params = [{transform_indices = @transform_0, window_bounds = array<i64: 32, 32>}, {pipeline_mode = #tpu.pipeline_mode<synchronous>, transform_indices = @transform_1, window_bounds = array<i64: 1, 32>}, {pipeline_mode = #tpu.pipeline_mode<synchronous>, transform_indices = @transform_2, window_bounds = array<i64: 1, 32>}, {pipeline_mode = #tpu.pipeline_mode<synchronous>, transform_indices = @transform_3, window_bounds = array<i64: 32, 96>}, {pipeline_mode = #tpu.pipeline_mode<synchronous>, transform_indices = @transform_4, window_bounds = array<i64: 1, 96>}, {transform_indices = @transform_5, window_bounds = array<i64: 32, 96>}]} {
    %c0 = arith.constant 0 : index
    %c0_0 = arith.constant 0 : index
    %0 = vector.load %arg1[%c0, %c0_0] : memref<32x32xbf16, #tpu.memory_space<vmem>>, vector<32x32xbf16>
    %1 = arith.extf %0 : vector<32x32xbf16> to vector<32x32xf32>
    %cst = arith.constant dense<0.000000e+00> : vector<32xf32>
    %2 = vector.multi_reduction <add>, %1, %cst [1] : vector<32x32xf32> to vector<32xf32>
    %3 = vector.shape_cast %2 : vector<32xf32> to vector<32x1xf32>
    %cst_1 = arith.constant 3.200000e+01 : f32
    %4 = vector.broadcast %cst_1 : f32 to vector<32x1xf32>
    %5 = arith.divf %3, %4 : vector<32x1xf32>
    %6 = vector.broadcast %5 : vector<32x1xf32> to vector<32x32xf32>
    %7 = arith.subf %1, %6 : vector<32x32xf32>
    %8 = arith.mulf %7, %7 : vector<32x32xf32>
    %cst_2 = arith.constant dense<0.000000e+00> : vector<32xf32>
    %9 = vector.multi_reduction <add>, %8, %cst_2 [1] : vector<32x32xf32> to vector<32xf32>
    %10 = vector.shape_cast %9 : vector<32xf32> to vector<32x1xf32>
    %cst_3 = arith.constant 3.200000e+01 : f32
    %11 = vector.broadcast %cst_3 : f32 to vector<32x1xf32>
    %12 = arith.divf %10, %11 : vector<32x1xf32>
    %cst_4 = arith.constant 9.99999974E-6 : f32
    %13 = vector.broadcast %cst_4 : f32 to vector<32x1xf32>
    %14 = arith.addf %12, %13 : vector<32x1xf32>
    %15 = math.rsqrt %14 : vector<32x1xf32>
    %16 = vector.broadcast %15 : vector<32x1xf32> to vector<32x32xf32>
    %17 = arith.mulf %7, %16 : vector<32x32xf32>
    %c0_5 = arith.constant 0 : index
    %c0_6 = arith.constant 0 : index
    %18 = vector.load %arg2[%c0_5, %c0_6] : memref<1x32xf32, #tpu.memory_space<vmem>>, vector<1x32xf32>
    %19 = vector.broadcast %18 : vector<1x32xf32> to vector<32x32xf32>
    %20 = arith.mulf %17, %19 : vector<32x32xf32>
    %c0_7 = arith.constant 0 : index
    %c0_8 = arith.constant 0 : index
    %21 = vector.load %arg3[%c0_7, %c0_8] : memref<1x32xf32, #tpu.memory_space<vmem>>, vector<1x32xf32>
    %22 = vector.broadcast %21 : vector<1x32xf32> to vector<32x32xf32>
    %23 = arith.addf %20, %22 : vector<32x32xf32>
    %24 = arith.truncf %23 : vector<32x32xf32> to vector<32x32xbf16>
    %c0_9 = arith.constant 0 : index
    %c0_10 = arith.constant 0 : index
    %25 = vector.load %arg4[%c0_9, %c0_10] : memref<32x96xbf16, #tpu.memory_space<vmem>>, vector<32x96xbf16>
    %cst_11 = arith.constant dense<0.000000e+00> : vector<32x96xf32>
    %26 = tpu.matmul %24, %25, %cst_11 {dimension_numbers = #tpu.dot_dimension_numbers<[1], [0], [0], [1], [0, 0, 1, 1], [], []>} : vector<32x32xbf16>, vector<32x96xbf16>, vector<32x96xf32> -> vector<32x96xf32>
    %c0_12 = arith.constant 0 : index
    %c0_13 = arith.constant 0 : index
    %27 = vector.load %arg5[%c0_12, %c0_13] : memref<1x96xf32, #tpu.memory_space<vmem>>, vector<1x96xf32>
    %28 = vector.broadcast %27 : vector<1x96xf32> to vector<32x96xf32>
    %29 = arith.addf %26, %28 : vector<32x96xf32>
    %30 = arith.truncf %29 : vector<32x96xf32> to vector<32x96xbf16>
    %c0_14 = arith.constant 0 : index
    %c0_15 = arith.constant 0 : index
    %31 = vector.load %arg6[%c0_14, %c0_15] : memref<32x96xbf16, #tpu.memory_space<vmem>>, vector<32x96xbf16>
    tpu.vector_store %arg6[%c0_14, %c0_15], %30 {strides = array<i32>} : memref<32x96xbf16, #tpu.memory_space<vmem>>, vector<32x96xbf16>,
    return
  }
  func.func @transform_0(%arg0: i32) -> (i32, i32) {
    %c0_i32 = arith.constant 0 : i32
    %c0_i32_0 = arith.constant 0 : i32
    return %arg0, %c0_i32 : i32, i32
  }
  func.func @transform_1(%arg0: i32) -> (i32, i32) {
    %c0_i32 = arith.constant 0 : i32
    %c0_i32_0 = arith.constant 0 : i32
    %c0_i32_1 = arith.constant 0 : i32
    return %c0_i32, %c0_i32_0 : i32, i32
  }
  func.func @transform_2(%arg0: i32) -> (i32, i32) {
    %c0_i32 = arith.constant 0 : i32
    %c0_i32_0 = arith.constant 0 : i32
    %c0_i32_1 = arith.constant 0 : i32
    return %c0_i32, %c0_i32_0 : i32, i32
  }
  func.func @transform_3(%arg0: i32) -> (i32, i32) {
    %c0_i32 = arith.constant 0 : i32
    %c0_i32_0 = arith.constant 0 : i32
    %c0_i32_1 = arith.constant 0 : i32
    return %c0_i32, %c0_i32_0 : i32, i32
  }
  func.func @transform_4(%arg0: i32) -> (i32, i32) {
    %c0_i32 = arith.constant 0 : i32
    %c0_i32_0 = arith.constant 0 : i32
    %c0_i32_1 = arith.constant 0 : i32
    return %c0_i32, %c0_i32_0 : i32, i32
  }
  func.func @transform_5(%arg0: i32) -> (i32, i32) {
    %c0_i32 = arith.constant 0 : i32
    %c0_i32_0 = arith.constant 0 : i32
    return %arg0, %c0_i32 : i32, i32
  }
}

</mosaic_0001>

<llo_original>
// kernel: tpu_custom_call.1
$region0: #{tpu_custom_call.1}
  #allocation0 [shape = 'u32[]', space=smem, size = 0x4, offset = 0x4, fixed_abs, tag = 'smem constant byte address 0x4 - core index']
  #allocation1 [shape = 'u32[144,128]{1,0:T(1,128)}', space=vmem, size = 0x12000, scoped, tag = 'internal scratch']
  %s0 = inlined_call_operand.hbm [shape: bf16[32,32], index: 0, kind: input, shape index: {}]
  %s1 = inlined_call_operand.vmem [shape: f32[1,32], index: 1, kind: input, shape index: {}]
  %s2 = inlined_call_operand.vmem [shape: f32[1,32], index: 2, kind: input, shape index: {}]
  %s3 = inlined_call_operand.hbm [shape: bf16[32,96], index: 3, kind: input, shape index: {}]
  %s4 = inlined_call_operand.vmem [shape: f32[1,96], index: 4, kind: input, shape index: {}]
  %s5 = inlined_call_operand.hbm [shape: bf16[32,96], index: 5, kind: output, shape index: {}]
  %s6 = sld [smem:[#allocation0]]
  $region38: #{tpu_custom_call.1} parent=0
    _
  %s8 = ssub.s32 1, %s6
  %s9 = scalar_select 0, %s8, %s6
  $region1: #{tpu_custom_call.1} parent=0
    #allocation2 [shape = 'u8[8192]{0}', space=vmem, size = 0x2000, scoped, tag = 'input window, operand 0, single buffered']
    #allocation3 [shape = 's32[1]{0}', space=sflag, size = 0x4, scoped, tag = 'scoped memory for tpu_custom_call.1']
    #allocation4 [shape = 's32[1]{0}', space=sflag, size = 0x4, scoped, tag = 'scoped memory for tpu_custom_call.1']
    #allocation5 [shape = 'u8[8192]{0}', space=vmem, size = 0x2000, scoped, tag = 'input window, operand 3, single buffered']
    #allocation6 [shape = 's32[1]{0}', space=sflag, size = 0x4, scoped, tag = 'scoped memory for tpu_custom_call.1']
    #allocation7 [shape = 'u8[8192]{0}', space=vmem, size = 0x2000, scoped, tag = 'output window, operand 0, single buffered']
    %10 = vsyncpa [#allocation3], 0
    %11 = vsyncpa [#allocation6], 0
    %12 = vsyncpa [#allocation4], 0
    // Predicated region
    $region2: #{tpu_custom_call.1} parent=1 // pred_check
      _
    $region3: #{tpu_custom_call.1} parent=1 // pred_check_branch
      %14 = sbr.rel (0) target = $region5
    $region4: #{tpu_custom_call.1} parent=1 // pred_region
      %s16 = ssub.s32 256, 256
      %17 = vsyncadd [#allocation3], %s16
      %s18 = sshll.u32 [#allocation2], 4
      %s19 = int_to_ptr.vmem [resolvable:$true] %s18
      %24 = dma.hbm_to_vmem [thread:$0]  %s0, 256, %s19, [#allocation3], 64, 64, 4
    $region5: #{tpu_custom_call.1} parent=1 // pred_fallthru
      _
    // Predicated region
    $region6: #{tpu_custom_call.1} parent=1 // pred_check
      _
    $region7: #{tpu_custom_call.1} parent=1 // pred_check_branch
      %26 = sbr.rel (0) target = $region9
    $region8: #{tpu_custom_call.1} parent=1 // pred_region
      _
    $region9: #{tpu_custom_call.1} parent=1 // pred_fallthru
      _
    // Predicated region
    $region10: #{tpu_custom_call.1} parent=1 // pred_check
      _
    $region11: #{tpu_custom_call.1} parent=1 // pred_check_branch
      %28 = sbr.rel (0) target = $region13
    $region12: #{tpu_custom_call.1} parent=1 // pred_region
      _
    $region13: #{tpu_custom_call.1} parent=1 // pred_fallthru
      _
    // Predicated region
    $region14: #{tpu_custom_call.1} parent=1 // pred_check
      _
    $region15: #{tpu_custom_call.1} parent=1 // pred_check_branch
      %30 = sbr.rel (0) target = $region17
    $region16: #{tpu_custom_call.1} parent=1 // pred_region
      %s32 = ssub.s32 256, 256
      %33 = vsyncadd [#allocation6], %s32
      %s34 = sshll.u32 [#allocation5], 4
      %s35 = int_to_ptr.vmem [resolvable:$true] %s34
      %40 = dma.hbm_to_vmem [thread:$0]  %s3, 256, %s35, [#allocation6], 64, 64, 4
    $region17: #{tpu_custom_call.1} parent=1 // pred_fallthru
      _
    // Predicated region
    $region18: #{tpu_custom_call.1} parent=1 // pred_check
      _
    $region19: #{tpu_custom_call.1} parent=1 // pred_check_branch
      %42 = sbr.rel (0) target = $region21
    $region20: #{tpu_custom_call.1} parent=1 // pred_region
      _
    $region21: #{tpu_custom_call.1} parent=1 // pred_fallthru
      _
    // Predicated region
    $region22: #{tpu_custom_call.1} parent=1 // pred_check
      _
    $region23: #{tpu_custom_call.1} parent=1 // pred_check_branch
      %44 = sbr.rel (0) target = $region25
    $region24: #{tpu_custom_call.1} parent=1 // pred_region
      %45 = dma.done [#allocation3], 256
    $region25: #{tpu_custom_call.1} parent=1 // pred_fallthru
      _
    // Predicated region
    $region26: #{tpu_custom_call.1} parent=1 // pred_check
      _
    $region27: #{tpu_custom_call.1} parent=1 // pred_check_branch
      %47 = sbr.rel (0) target = $region29
    $region28: #{tpu_custom_call.1} parent=1 // pred_region
      %48 = dma.done [#allocation6], 256
    $region29: #{tpu_custom_call.1} parent=1 // pred_fallthru
      _
    %v50 = vld [vmem:[#allocation2] sm:$0xf]
    %v51 = vld [vmem:[#allocation2 + $0x4] sm:$0xf]
    %v52 = vld [vmem:[#allocation2 + $0x8] sm:$0xf]
    %v53 = vld [vmem:[#allocation2 + $0xc] sm:$0xf]
    %v54 = vunpack.c.l.bf16 %v50
    %v55 = vunpack.c.l.bf16 %v51
    %v56 = vunpack.c.l.bf16 %v52
    %v57 = vunpack.c.l.bf16 %v53
    %vm58 = vcmask 261120
    %v59 = vsel %vm58, %v54, 0.0
    %60 = vadd.xlane.f32.xlu0 %v59
    %v61 = vpop.xlane.xlu0 %60
    %v62 = vsel %vm58, %v55, 0.0
    %63 = vadd.xlane.f32.xlu0 %v62
    %v64 = vpop.xlane.xlu0 %63
    %v65 = vsel %vm58, %v56, 0.0
    %66 = vadd.xlane.f32.xlu0 %v65
    %v67 = vpop.xlane.xlu0 %66
    %v68 = vsel %vm58, %v57, 0.0
    %69 = vadd.xlane.f32.xlu0 %v68
    %v70 = vpop.xlane.xlu0 %69
    %v71 = vrcp.pop 32.0
    %v72 = vmul.f32 %v61, %v71
    %v73 = vmul.f32 %v64, %v71
    %v74 = vmul.f32 %v67, %v71
    %v75 = vmul.f32 %v70, %v71
    %v76 = vsub.f32 %v54, %v72
    %v77 = vsub.f32 %v55, %v73
    %v78 = vsub.f32 %v56, %v74
    %v79 = vsub.f32 %v57, %v75
    %v80 = vmul.f32 %v76, %v76
    %v81 = vmul.f32 %v77, %v77
    %v82 = vmul.f32 %v78, %v78
    %v83 = vmul.f32 %v79, %v79
    %v84 = vsel %vm58, %v80, 0.0
    %85 = vadd.xlane.f32.xlu0 %v84
    %v86 = vpop.xlane.xlu0 %85
    %v87 = vsel %vm58, %v81, 0.0
    %88 = vadd.xlane.f32.xlu0 %v87
    %v89 = vpop.xlane.xlu0 %88
    %v90 = vsel %vm58, %v82, 0.0
    %91 = vadd.xlane.f32.xlu0 %v90
    %v92 = vpop.xlane.xlu0 %91
    %v93 = vsel %vm58, %v83, 0.0
    %94 = vadd.xlane.f32.xlu0 %v93
    %v95 = vpop.xlane.xlu0 %94
    %v96 = vmul.f32 %v86, %v71
    %v97 = vmul.f32 %v89, %v71
    %v98 = vmul.f32 %v92, %v71
    %v99 = vmul.f32 %v95, %v71
    %v100 = vadd.f32 %v96, 1e-05
    %v101 = vadd.f32 %v97, 1e-05
    %v102 = vadd.f32 %v98, 1e-05
    %v103 = vadd.f32 %v99, 1e-05
    %v104 = vrsqrt.pop %v100
    %v105 = vrsqrt.pop %v101
    %v106 = vrsqrt.pop %v102
    %v107 = vrsqrt.pop %v103
    %v108 = vmul.f32 %v76, %v104
    %v109 = vmul.f32 %v77, %v105
    %v110 = vmul.f32 %v78, %v106
    %v111 = vmul.f32 %v79, %v107
    %v112 = vld [vmem:[%s1] sm:$0x1]
    %v114 = vlaneseq
    %v115 = vshrl.u32 %v114, 7
    %v116 = vsub.s32 0, %v115
    %v117 = vrot.slane %v112, %v116
    %v119 = vmul.f32 %v108, %v117
    %v120 = vmul.f32 %v109, %v117
    %v121 = vmul.f32 %v110, %v117
    %v122 = vmul.f32 %v111, %v117
    %v123 = vld [vmem:[%s2] sm:$0x1]
    %v125 = vlaneseq
    %v126 = vshrl.u32 %v125, 7
    %v127 = vsub.s32 0, %v126
    %v128 = vrot.slane %v123, %v127
    %v130 = vadd.f32 %v119, %v128
    %v131 = vadd.f32 %v120, %v128
    %v132 = vadd.f32 %v121, %v128
    %v133 = vadd.f32 %v122, %v128
    %v134 = vpack.c.bf16 %v131, %v130
    %v135 = vpack.c.bf16 %v133, %v132
    %v136 = vld [vmem:[#allocation5] sm:$0xf]
    %v137 = vld [vmem:[#allocation5 + $0x4] sm:$0xf]
    %v138 = vld [vmem:[#allocation5 + $0x8] sm:$0xf]
    %v139 = vld [vmem:[#allocation5 + $0xc] sm:$0xf]
    %v140 = vld [vmem:[%s4] sm:$0x1]
    %v142 = vlaneseq
    %v143 = vshrl.u32 %v142, 7
    %v144 = vsub.s32 0, %v143
    %v145 = vrot.slane %v140, %v144
    %v151 = vunpack.c.l.b16 %v136
    %v152 = vunpack.c.l.b16 %v137
    %v153 = vunpack.c.l.b16 %v138
    %v154 = vunpack.c.l.b16 %v139
    %v155 = vpack.c.b16 %v152, %v151
    %v156 = vpack.c.b16 %v154, %v153
    %v160 = vsel %vm58, %v134, 0
    %v163 = vsel %vm58, %v135, 0
    %165 = vmatprep.subr.bf16.mxu0 0
    %166 = vmatpush1.bf16.msra.mxu0 0
    %167 = vmatprep.subr.bf16.mxu0 0
    %168 = vmatpush1.bf16.msra.mxu0 0
    %169 = vmatprep.subr.bf16.mxu0 0
    %170 = vmatpush1.bf16.msra.mxu0 0
    %171 = vmatprep.subr.bf16.mxu0 0
    %172 = vmatpush1.bf16.msra.mxu0 0
    %173 = vmatprep.subr.bf16.mxu0 0
    %174 = vmatpush1.bf16.msra.mxu0 0
    %175 = vmatprep.subr.bf16.mxu0 0
    %176 = vmatpush1.bf16.msra.mxu0 0
    %177 = vmatprep.subr.bf16.mxu0 0
    %178 = vmatpush1.bf16.msra.mxu0 %v156
    %179 = vmatprep.subr.bf16.mxu0 0
    %180 = vmatpush1.bf16.msra.mxu0 %v155
    %181 = vmatprep.subr.bf16.mxu0 0
    %182 = vmatpush2.bf16.msra.mxu0 0
    %183 = vmatprep.subr.bf16.mxu0 0
    %184 = vmatpush2.bf16.msra.mxu0 0
    %185 = vmatprep.subr.bf16.mxu0 0
    %186 = vmatpush2.bf16.msra.mxu0 0
    %187 = vmatprep.subr.bf16.mxu0 0
    %188 = vmatpush2.bf16.msra.mxu0 0
    %189 = vmatprep.subr.bf16.mxu0 0
    %190 = vmatpush2.bf16.msra.mxu0 0
    %191 = vmatprep.subr.bf16.mxu0 0
    %192 = vmatpush2.bf16.msra.mxu0 0
    %193 = vmatprep.subr.bf16.mxu0 0
    %194 = vmatpush2.bf16.msra.mxu0 0
    %195 = vmatprep.subr.bf16.mxu0 0
    %196 = vmatpush2.bf16.msra.mxu0 0
    %197 = vmatprep.mubr.bf16.mxu0 0
    %198 = vmatmul.mubr.bf16.gmra.mxu0 %v160
    %v199 = vpop.f32.mrf.mxu0
    %v200 = vadd.f32 %v145, %v199
    %v201 = vpop.f32.mrf.mxu0
    %v202 = vpop.f32.mrf.mxu0
    %v203 = vadd.f32 %v145, %v202
    %v204 = vpop.f32.mrf.mxu0
    %205 = vmatprep.mubr.bf16.mxu0 0
    %206 = vmatmul.mubr.bf16.gmra.mxu0 %v163
    %v207 = vpop.f32.mrf.mxu0
    %v208 = vadd.f32 %v145, %v207
    %v209 = vpop.f32.mrf.mxu0
    %v210 = vpop.f32.mrf.mxu0
    %v211 = vadd.f32 %v145, %v210
    %v212 = vpop.f32.mrf.mxu0
    %213 = vdwg.mxu0
    %v214 = vpack.c.bf16 %v203, %v200
    %v215 = vpack.c.bf16 %v211, %v208
    %v218 = vunpack.c.l.b16 %v214
    %v219 = vunpack.c.h.b16 %v214
    %v220 = vunpack.c.l.b16 %v215
    %v221 = vunpack.c.h.b16 %v215
    %v222 = vpack.c.b16 %v218, %v218
    %v223 = vpack.c.b16 %v219, %v219
    %v224 = vpack.c.b16 %v220, %v220
    %v225 = vpack.c.b16 %v221, %v221
    %vm230 = vcmask 781312
    %231 = vst.msk [vmem:[#allocation7] sm:$0xf] %vm230, %v222
    %232 = vst.msk [vmem:[#allocation7 + $0x4] sm:$0xf] %vm230, %v223
    %233 = vst.msk [vmem:[#allocation7 + $0x8] sm:$0xf] %vm230, %v224
    %234 = vst.msk [vmem:[#allocation7 + $0xc] sm:$0xf] %vm230, %v225
    // Predicated region
    $region30: #{tpu_custom_call.1} parent=1 // pred_check
      _
    $region31: #{tpu_custom_call.1} parent=1 // pred_check_branch
      %236 = sbr.rel (0) target = $region33
    $region32: #{tpu_custom_call.1} parent=1 // pred_region
      %s238 = ssub.s32 256, 256
      %239 = vsyncadd [#allocation4], %s238
      %s240 = sshll.u32 [#allocation7], 4
      %s241 = int_to_ptr.vmem [resolvable:$true] %s240
      %246 = dma.vmem_to_hbm [thread:$0]  %s241, 256, %s5, [#allocation4], 64, 64, 4
    $region33: #{tpu_custom_call.1} parent=1 // pred_fallthru
      _
    // Predicated region
    $region34: #{tpu_custom_call.1} parent=1 // pred_check
      _
    $region35: #{tpu_custom_call.1} parent=1 // pred_check_branch
      %248 = sbr.rel (0) target = $region37
    $region36: #{tpu_custom_call.1} parent=1 // pred_region
      %249 = dma.done [#allocation4], 256
    $region37: #{tpu_custom_call.1} parent=1 // pred_fallthru
      _
    %250 = vsyncpa [#allocation3], 1
    %251 = vsyncpa [#allocation6], 1
    %252 = vsyncpa [#allocation4], 1

</llo_original>
